<compile_context>
chip_gen: v7x
topology: tpu7x:2x2x1
jax: 0.10.0
libtpu: 0.0.40
codegen_flags: <defaults>
</compile_context>

<pallas_src>
import jax
import jax.numpy as jnp
import numpy as np
from jax.experimental import pallas as pl
from jax.experimental.pallas import tpu as pltpu


# ---------------------------------------------------------------------------
# Tiling plan for the loss reduction
# ---------------------------------------------------------------------------
def _vmem_budget_bytes():
    """Generation-aware pipeline/scratch budget; stays under scoped-VMEM defaults."""
    try:
        kind = jax.devices()[0].device_kind.lower()
    except Exception:
        kind = ""
    if "v7" in kind or "v6" in kind:
        return 20 << 20   # 32 MiB scoped default (v6e / v7x) with ~35% headroom
    return 12 << 20       # v5e scoped default is only 16 MiB; stay conservative


def _plan_row_tiling(H, W):
    """Pick (tile_rows, num_tiles); prefer one block covering the whole image."""
    bytes_per_row = 5 * W * 4          # 2 inputs x 2 pipeline buffers + 1 f32 acc
    max_rows = max(8, _vmem_budget_bytes() // bytes_per_row)
    if H <= max_rows:
        return H, 1                    # grid=(1,): no per-step pipeline overhead
    tile_rows = (max_rows // 8) * 8    # (8,128) sublane alignment for blocked rows
    return tile_rows, pl.cdiv(H, tile_rows)


# ---------------------------------------------------------------------------
# Fused projection + loss kernel
# ---------------------------------------------------------------------------
def _make_fused_kernel(mode, M, b, *, single_block, H, tile_rows):
    # Camera constants baked into the kernel (folded once at init).
    m00, m01, m02 = float(M[0, 0]), float(M[0, 1]), float(M[0, 2])
    m10, m11, m12 = float(M[1, 0]), float(M[1, 1]), float(M[1, 2])
    m20, m21, m22 = float(M[2, 0]), float(M[2, 1]), float(M[2, 2])
    b0, b1, b2 = float(b[0]), float(b[1]), float(b[2])

    def project(v_ref, uvz_ref):
        # 9 scalar-broadcast FMAs on the VPU (a 3-row MXU operand would waste
        # >97% of the systolic array).
        x = v_ref[0:1, :]
        y = v_ref[1:2, :]
        z = v_ref[2:3, :]
        pu = m00 * x + m01 * y + m02 * z + b0
        pv = m10 * x + m11 * y + m12 * z + b1
        pd = m20 * x + m21 * y + m22 * z + b2
        inv_pd = 1.0 / pd            # one exact reciprocal shared by u and v
        # Three sublane-slice stores (no sublane-axis concat -> no XLU relayout).
        uvz_ref[0:1, :] = pu * inv_pd
        uvz_ref[1:2, :] = pv * inv_pd
        uvz_ref[2:3, :] = pd

    def sq_diff(d, g):
        if mode == "depth":
            diff = jnp.where(d > 0.0, d - 0.001 * g, 0.0)   # cmp+select mask
        else:
            diff = d - g
        return diff * diff

    if single_block:
        # grid=(1,): whole image in one tile -> no scratch accumulator, no pl.when.
        def kernel(v_ref, d_ref, g_ref, uvz_ref, loss_ref):
            project(v_ref, uvz_ref)
            loss_ref[...] = jnp.sum(sq_diff(d_ref[...], g_ref[...]), keepdims=True)
        return kernel

    need_row_mask = (H % tile_rows) != 0

    def kernel(v_ref, d_ref, g_ref, uvz_ref, loss_ref, acc_ref):
        i = pl.program_id(0)

        @pl.when(i == 0)
        def _():
            acc_ref[...] = jnp.zeros_like(acc_ref)
            project(v_ref, uvz_ref)

        sq = sq_diff(d_ref[...], g_ref[...])
        if need_row_mask:
            # grid = cdiv(H, tile_rows): zero out padded rows of the last tile.
            rows = jax.lax.broadcasted_iota(jnp.int32, sq.shape, 0) + i * tile_rows
            sq = jnp.where(rows < H, sq, 0.0)
        acc_ref[...] += sq           # elementwise VPU accumulate per step

        @pl.when(i == pl.num_programs(0) - 1)
        def _():
            # Single cross-lane/sublane XLU reduce, once at the end.
            loss_ref[...] = jnp.sum(acc_ref[...], keepdims=True)

    return kernel


def _build_fused_forward(mode, M, b, N, H, W):
    tile_rows, num_tiles = _plan_row_tiling(H, W)
    kernel = _make_fused_kernel(mode, M, b, single_block=(num_tiles == 1),
                                H=H, tile_rows=tile_rows)
    call = pl.pallas_call(
        kernel,
        out_shape=(jax.ShapeDtypeStruct((3, N), jnp.float32),    # uvz
                   jax.ShapeDtypeStruct((1, 1), jnp.float32)),   # loss
        grid=(num_tiles,),
        in_specs=[
            pl.BlockSpec((3, N), lambda i: (0, 0)),              # vertices (resident)
            pl.BlockSpec((tile_rows, W), lambda i: (i, 0)),      # rendered depth tile
            pl.BlockSpec((tile_rows, W), lambda i: (i, 0)),      # gt depth tile
        ],
        out_specs=(
            pl.BlockSpec((3, N), lambda i: (0, 0)),              # resident across grid
            pl.BlockSpec((1, 1), lambda i: (0, 0)),              # resident scalar out
        ),
        scratch_shapes=([] if num_tiles == 1
                        else [pltpu.VMEM((tile_rows, W), jnp.float32)]),
        # Resident (3,N)/(1,1) outputs + scratch accumulator => the grid axis MUST
        # stay "arbitrary" (sequential).  TODO(synk): for v7x megacore on large
        # images, switch the grid>1 path to per-block partial sums on a "parallel"
        # axis and finish the sum in XLA.
        compiler_params=pltpu.CompilerParams(dimension_semantics=("arbitrary",)),
    )
    return jax.jit(lambda v3n, d, g: call(v3n, d, g))


# ---------------------------------------------------------------------------
# Model (deterministic synthetic parameters; no file I/O)
# ---------------------------------------------------------------------------
class IntriniscModelPallas:
    def __init__(self, mode="depth", gt_input=None, num_vertices=256, num_faces=512,
                 image_hw=(48, 128), key=None):
        if key is None:
            key = jax.random.PRNGKey(0)
        kv, kd, kc, kg = jax.random.split(key, 4)

        # Synthetic deterministic mesh (replaces readObj); placed in front of camera.
        self.vertices = (0.5 * jax.random.normal(kv, (1, num_vertices, 3), jnp.float32)
                         + jnp.array([0.0, 0.0, 3.0], jnp.float32))
        # SoA (3, N) layout precomputed once -> no transposes at forward time.
        # TODO(synk): for real meshes (N >> 256) use a sublane-dense (3, N//128, 128)
        # blocked layout so the projection fills all 8 sublanes of each vreg.
        self.vertices_3n = jnp.transpose(self.vertices[0], (1, 0)).astype(jnp.float32)
        self.faces = (jnp.arange(num_faces * 3, dtype=jnp.int32) % num_vertices
                      ).reshape(1, num_faces, 3)
        texture_size = 2
        self.textures = jnp.ones(
            (1, num_faces, texture_size, texture_size, texture_size, 3), jnp.float32)

        # Camera parameters identical to the PyTorch module.
        K_np = np.array([[573.353 * 1.2, 0.0, 319.85],
                         [0.0, 576.057, 240.632],
                         [0.0, 0.0, 1.0]], np.float32)
        R_np = np.eye(3, dtype=np.float32)
        t_np = np.zeros((3,), np.float32)
        self.K = jnp.asarray(K_np).reshape(1, 3, 3)
        self.R = jnp.asarray(R_np).reshape(1, 3, 3)
        self.t = jnp.asarray(t_np).reshape(1, 1, 3)
        self.mode = mode

        H, W = image_hw
        if gt_input is None:
            gt_input = 1000.0 * jax.random.uniform(kg, (H, W), jnp.float32)
        self.gtDepthMap = gt_input.astype(jnp.float32)

        # TODO(synk): triangle rasterization / anti-aliasing stand-in (see header).
        depth_vals = 2.0 + jax.random.uniform(kd, (H, W), jnp.float32)
        coverage = jax.random.uniform(kc, (H, W), jnp.float32)
        self._rendered_depth = jnp.where(coverage > 0.4, depth_vals, 0.0)

        # Fold the two 3x3 camera stages on the host, ONCE: K(Rv + t) = (KR)v + (Kt),
        # and build the fused pallas_call with those constants baked in.
        M_np = K_np @ R_np
        b_np = K_np @ t_np
        self._fused = _build_fused_forward(mode, M_np, b_np, num_vertices, H, W)

    def forward(self):
        # ONE fused pallas_call: mesh projection (uvz = [u; v; depth]) + loss reduce.
        uvz, loss = self._fused(self.vertices_3n, self._rendered_depth, self.gtDepthMap)
        self.last_uvz = uvz
        return loss[0, 0]


if __name__ == "__main__":
    key = jax.random.PRNGKey(0)
    model = IntriniscModelPallas(mode="depth", key=key)

    loss = jax.block_until_ready(model.forward())

    # --- reference checks (plain JAX) ---
    d = model._rendered_depth
    g = model.gtDepthMap
    mask = (d > 0).astype(jnp.float32)
    ref_depth_loss = jnp.sum((mask * (d - 0.001 * g)) ** 2)
    assert jnp.allclose(loss, ref_depth_loss, rtol=1e-4, atol=1e-2), (loss, ref_depth_loss)

    # Projection result vs. reference (uvz is (3, N))
    uvz = jax.block_until_ready(model.last_uvz)
    cam = model.vertices[0] @ model.R[0].T + model.t[0]
    p = cam @ model.K[0].T
    ref_uvz = jnp.concatenate([p[:, :2] / p[:, 2:3], p[:, 2:3]], axis=1)  # (N, 3)
    assert jnp.allclose(uvz, ref_uvz.T, rtol=1e-4, atol=1e-3)

    # L2Loss path (mode != 'depth'); same key -> identical synthetic depth/gt.
    model_l2 = IntriniscModelPallas(mode="l2", key=key)
    l2 = jax.block_until_ready(model_l2.forward())
    ref_l2 = jnp.sum((d - g) ** 2)
    assert jnp.allclose(l2, ref_l2, rtol=1e-4), (l2, ref_l2)

    print("KERNEL_OK")
</pallas_src>

<mosaic_0001>
module attributes {stable_mosaic.version = 11 : i64} {
  func.func @kernel(%arg0: i32, %arg1: memref<3x256xf32, #tpu.memory_space<vmem>>, %arg2: memref<48x128xf32, #tpu.memory_space<vmem>>, %arg3: memref<48x128xf32, #tpu.memory_space<vmem>>, %arg4: memref<3x256xf32, #tpu.memory_space<vmem>>, %arg5: memref<1x1xf32, #tpu.memory_space<vmem>>) attributes {dimension_semantics = [#tpu.dimension_semantics<arbitrary>], iteration_bounds = array<i64: 1>, scalar_prefetch = 0 : i64, scratch_operands = 0 : i64, tpu.core_type = #tpu.core_type<tc>, window_params = [{pipeline_mode = #tpu.pipeline_mode<synchronous>, transform_indices = @transform_0, window_bounds = array<i64: 3, 256>}, {transform_indices = @transform_1, window_bounds = array<i64: 48, 128>}, {transform_indices = @transform_2, window_bounds = array<i64: 48, 128>}, {pipeline_mode = #tpu.pipeline_mode<synchronous>, transform_indices = @transform_3, window_bounds = array<i64: 3, 256>}, {pipeline_mode = #tpu.pipeline_mode<synchronous>, transform_indices = @transform_4, window_bounds = array<i64: 1, 1>}]} {
    %c0 = arith.constant 0 : index
    %c0_0 = arith.constant 0 : index
    %0 = vector.load %arg1[%c0, %c0_0] : memref<3x256xf32, #tpu.memory_space<vmem>>, vector<1x256xf32>
    %c1 = arith.constant 1 : index
    %c0_1 = arith.constant 0 : index
    %1 = vector.load %arg1[%c1, %c0_1] : memref<3x256xf32, #tpu.memory_space<vmem>>, vector<1x256xf32>
    %c2 = arith.constant 2 : index
    %c0_2 = arith.constant 0 : index
    %2 = vector.load %arg1[%c2, %c0_2] : memref<3x256xf32, #tpu.memory_space<vmem>>, vector<1x256xf32>
    %cst = arith.constant 688.023621 : f32
    %3 = vector.broadcast %cst : f32 to vector<1x256xf32>
    %4 = arith.mulf %3, %0 : vector<1x256xf32>
    %cst_3 = arith.constant 0.000000e+00 : f32
    %5 = vector.broadcast %cst_3 : f32 to vector<1x256xf32>
    %6 = arith.mulf %5, %1 : vector<1x256xf32>
    %7 = arith.addf %4, %6 : vector<1x256xf32>
    %cst_4 = arith.constant 3.198500e+02 : f32
    %8 = vector.broadcast %cst_4 : f32 to vector<1x256xf32>
    %9 = arith.mulf %8, %2 : vector<1x256xf32>
    %10 = arith.addf %7, %9 : vector<1x256xf32>
    %cst_5 = arith.constant 0.000000e+00 : f32
    %11 = vector.broadcast %cst_5 : f32 to vector<1x256xf32>
    %12 = arith.addf %10, %11 : vector<1x256xf32>
    %cst_6 = arith.constant 0.000000e+00 : f32
    %13 = vector.broadcast %cst_6 : f32 to vector<1x256xf32>
    %14 = arith.mulf %13, %0 : vector<1x256xf32>
    %cst_7 = arith.constant 5.760570e+02 : f32
    %15 = vector.broadcast %cst_7 : f32 to vector<1x256xf32>
    %16 = arith.mulf %15, %1 : vector<1x256xf32>
    %17 = arith.addf %14, %16 : vector<1x256xf32>
    %cst_8 = arith.constant 2.406320e+02 : f32
    %18 = vector.broadcast %cst_8 : f32 to vector<1x256xf32>
    %19 = arith.mulf %18, %2 : vector<1x256xf32>
    %20 = arith.addf %17, %19 : vector<1x256xf32>
    %cst_9 = arith.constant 0.000000e+00 : f32
    %21 = vector.broadcast %cst_9 : f32 to vector<1x256xf32>
    %22 = arith.addf %20, %21 : vector<1x256xf32>
    %cst_10 = arith.constant 0.000000e+00 : f32
    %23 = vector.broadcast %cst_10 : f32 to vector<1x256xf32>
    %24 = arith.mulf %23, %0 : vector<1x256xf32>
    %cst_11 = arith.constant 0.000000e+00 : f32
    %25 = vector.broadcast %cst_11 : f32 to vector<1x256xf32>
    %26 = arith.mulf %25, %1 : vector<1x256xf32>
    %27 = arith.addf %24, %26 : vector<1x256xf32>
    %cst_12 = arith.constant 1.000000e+00 : f32
    %28 = vector.broadcast %cst_12 : f32 to vector<1x256xf32>
    %29 = arith.mulf %28, %2 : vector<1x256xf32>
    %30 = arith.addf %27, %29 : vector<1x256xf32>
    %cst_13 = arith.constant 0.000000e+00 : f32
    %31 = vector.broadcast %cst_13 : f32 to vector<1x256xf32>
    %32 = arith.addf %30, %31 : vector<1x256xf32>
    %cst_14 = arith.constant 1.000000e+00 : f32
    %33 = vector.broadcast %cst_14 : f32 to vector<1x256xf32>
    %34 = arith.divf %33, %32 : vector<1x256xf32>
    %35 = arith.mulf %12, %34 : vector<1x256xf32>
    %c0_15 = arith.constant 0 : index
    %c0_16 = arith.constant 0 : index
    %36 = vector.load %arg4[%c0_15, %c0_16] : memref<3x256xf32, #tpu.memory_space<vmem>>, vector<1x256xf32>
    tpu.vector_store %arg4[%c0_15, %c0_16], %35 {strides = array<i32>} : memref<3x256xf32, #tpu.memory_space<vmem>>, vector<1x256xf32>,
    %37 = arith.mulf %22, %34 : vector<1x256xf32>
    %c1_17 = arith.constant 1 : index
    %c0_18 = arith.constant 0 : index
    %38 = vector.load %arg4[%c1_17, %c0_18] : memref<3x256xf32, #tpu.memory_space<vmem>>, vector<1x256xf32>
    tpu.vector_store %arg4[%c1_17, %c0_18], %37 {strides = array<i32>} : memref<3x256xf32, #tpu.memory_space<vmem>>, vector<1x256xf32>,
    %c2_19 = arith.constant 2 : index
    %c0_20 = arith.constant 0 : index
    %39 = vector.load %arg4[%c2_19, %c0_20] : memref<3x256xf32, #tpu.memory_space<vmem>>, vector<1x256xf32>
    tpu.vector_store %arg4[%c2_19, %c0_20], %32 {strides = array<i32>} : memref<3x256xf32, #tpu.memory_space<vmem>>, vector<1x256xf32>,
    %c0_21 = arith.constant 0 : index
    %c0_22 = arith.constant 0 : index
    %40 = vector.load %arg2[%c0_21, %c0_22] : memref<48x128xf32, #tpu.memory_space<vmem>>, vector<48x128xf32>
    %c0_23 = arith.constant 0 : index
    %c0_24 = arith.constant 0 : index
    %41 = vector.load %arg3[%c0_23, %c0_24] : memref<48x128xf32, #tpu.memory_space<vmem>>, vector<48x128xf32>
    %cst_25 = arith.constant 0.000000e+00 : f32
    %42 = vector.broadcast %cst_25 : f32 to vector<48x128xf32>
    %43 = arith.cmpf ogt, %40, %42 : vector<48x128xf32>
    %cst_26 = arith.constant 1.000000e-03 : f32
    %44 = vector.broadcast %cst_26 : f32 to vector<48x128xf32>
    %45 = arith.mulf %44, %41 : vector<48x128xf32>
    %46 = arith.subf %40, %45 : vector<48x128xf32>
    %cst_27 = arith.constant 0.000000e+00 : f32
    %47 = vector.broadcast %cst_27 : f32 to vector<48x128xf32>
    %48 = arith.select %43, %46, %47 : vector<48x128xi1>, vector<48x128xf32>
    %49 = arith.mulf %48, %48 : vector<48x128xf32>
    %50 = vector.shape_cast %49 : vector<48x128xf32> to vector<1x48x128xf32>
    %cst_28 = arith.constant dense<0.000000e+00> : vector<1xf32>
    %51 = vector.multi_reduction <add>, %50, %cst_28 [1, 2] : vector<1x48x128xf32> to vector<1xf32>
    %52 = vector.shape_cast %51 : vector<1xf32> to vector<1x1x1xf32>
    %53 = vector.extract %52[0, 0, 0] : f32 from vector<1x1x1xf32>
    %54 = vector.broadcast %53 : f32 to vector<1x1xf32>
    %c0_29 = arith.constant 0 : index
    %c0_30 = arith.constant 0 : index
    %55 = vector.load %arg5[%c0_29, %c0_30] : memref<1x1xf32, #tpu.memory_space<vmem>>, vector<1x1xf32>
    tpu.vector_store %arg5[%c0_29, %c0_30], %54 {strides = array<i32>} : memref<1x1xf32, #tpu.memory_space<vmem>>, vector<1x1xf32>,
    return
  }
  func.func @transform_0(%arg0: i32) -> (i32, i32) {
    %c0_i32 = arith.constant 0 : i32
    %c0_i32_0 = arith.constant 0 : i32
    %c0_i32_1 = arith.constant 0 : i32
    return %c0_i32, %c0_i32_0 : i32, i32
  }
  func.func @transform_1(%arg0: i32) -> (i32, i32) {
    %c0_i32 = arith.constant 0 : i32
    %c0_i32_0 = arith.constant 0 : i32
    return %arg0, %c0_i32 : i32, i32
  }
  func.func @transform_2(%arg0: i32) -> (i32, i32) {
    %c0_i32 = arith.constant 0 : i32
    %c0_i32_0 = arith.constant 0 : i32
    return %arg0, %c0_i32 : i32, i32
  }
  func.func @transform_3(%arg0: i32) -> (i32, i32) {
    %c0_i32 = arith.constant 0 : i32
    %c0_i32_0 = arith.constant 0 : i32
    %c0_i32_1 = arith.constant 0 : i32
    return %c0_i32, %c0_i32_0 : i32, i32
  }
  func.func @transform_4(%arg0: i32) -> (i32, i32) {
    %c0_i32 = arith.constant 0 : i32
    %c0_i32_0 = arith.constant 0 : i32
    %c0_i32_1 = arith.constant 0 : i32
    return %c0_i32, %c0_i32_0 : i32, i32
  }
}

</mosaic_0001>

<llo_original>
// kernel: _lambda_.1
$region0: #{_lambda_.1}
  #allocation0 [shape = 'u32[]', space=smem, size = 0x4, offset = 0x4, fixed_abs, tag = 'smem constant byte address 0x4 - core index']
  #allocation1 [shape = 'u32[144,128]{1,0:T(1,128)}', space=vmem, size = 0x12000, scoped, tag = 'internal scratch']
  %s0 = inlined_call_operand.hbm [shape: f32[3,256], index: 0, kind: input, shape index: {}]
  %s1 = inlined_call_operand.hbm [shape: f32[48,128], index: 1, kind: input, shape index: {}]
  %s2 = inlined_call_operand.hbm [shape: f32[48,128], index: 2, kind: input, shape index: {}]
  %s3 = inlined_call_operand.hbm [shape: f32[3,256], index: 3, kind: output, shape index: {0}]
  %s4 = inlined_call_operand.hbm [shape: f32[1,1], index: 4, kind: output, shape index: {1}]
  %5 = xla_tuple %s3, %s4
  %s6 = sld [smem:[#allocation0]]
  $region42: #{_lambda_.1} parent=0
    _
  %s8 = ssub.s32 1, %s6
  %s9 = scalar_select 0, %s8, %s6
  $region1: #{_lambda_.1} parent=0
    #allocation2 [shape = 'u8[4096]{0}', space=vmem, size = 0x1000, scoped, tag = 'input window, operand 0, single buffered']
    #allocation3 [shape = 's32[1]{0}', space=sflag, size = 0x4, scoped, tag = 'scoped memory for _lambda_.1']
    #allocation4 [shape = 's32[1]{0}', space=sflag, size = 0x4, scoped, tag = 'scoped memory for _lambda_.1']
    #allocation5 [shape = 'u8[24576]{0}', space=vmem, size = 0x6000, scoped, tag = 'input window, operand 1, single buffered']
    #allocation6 [shape = 's32[1]{0}', space=sflag, size = 0x4, scoped, tag = 'scoped memory for _lambda_.1']
    #allocation7 [shape = 'u8[24576]{0}', space=vmem, size = 0x6000, scoped, tag = 'input window, operand 2, single buffered']
    #allocation8 [shape = 'u8[4096]{0}', space=vmem, size = 0x1000, scoped, tag = 'output window, operand 0, single buffered']
    #allocation9 [shape = 'u8[512]{0}', space=vmem, size = 0x400, scoped, tag = 'output window, operand 1, single buffered']
    #allocation10 [shape = 's32[1]{0}', space=sflag, size = 0x4, scoped, tag = 'scoped memory for _lambda_.1']
    %10 = vsyncpa [#allocation3], 0
    %11 = vsyncpa [#allocation6], 0
    %12 = vsyncpa [#allocation4], 0
    %13 = vsyncpa [#allocation10], 0
    // Predicated region
    $region2: #{_lambda_.1} parent=1 // pred_check
      _
    $region3: #{_lambda_.1} parent=1 // pred_check_branch
      %15 = sbr.rel (0) target = $region5
    $region4: #{_lambda_.1} parent=1 // pred_region
      %s17 = ssub.s32 128, 128
      %18 = vsyncadd [#allocation3], %s17
      %s20 = sshll.u32 [#allocation2], 4
      %s21 = int_to_ptr.vmem [resolvable:$true] %s20
      %23 = dma.hbm_to_vmem [thread:$0]  %s0, 128, %s21, [#allocation3]
    $region5: #{_lambda_.1} parent=1 // pred_fallthru
      _
    // Predicated region
    $region6: #{_lambda_.1} parent=1 // pred_check
      _
    $region7: #{_lambda_.1} parent=1 // pred_check_branch
      %25 = sbr.rel (0) target = $region9
    $region8: #{_lambda_.1} parent=1 // pred_region
      %s27 = ssub.s32 768, 768
      %28 = vsyncadd [#allocation6], %s27
      %s29 = sshll.u32 [#allocation5], 4
      %s30 = int_to_ptr.vmem [resolvable:$true] %s29
      %35 = dma.hbm_to_vmem [thread:$0]  %s1, 768, %s30, [#allocation6], 128, 128, 8
    $region9: #{_lambda_.1} parent=1 // pred_fallthru
      _
    // Predicated region
    $region10: #{_lambda_.1} parent=1 // pred_check
      _
    $region11: #{_lambda_.1} parent=1 // pred_check_branch
      %37 = sbr.rel (0) target = $region13
    $region12: #{_lambda_.1} parent=1 // pred_region
      %s39 = ssub.s32 768, 768
      %40 = vsyncadd [#allocation6], %s39
      %s41 = sshll.u32 [#allocation7], 4
      %s42 = int_to_ptr.vmem [resolvable:$true] %s41
      %47 = dma.hbm_to_vmem [thread:$0]  %s2, 768, %s42, [#allocation6], 128, 128, 8
    $region13: #{_lambda_.1} parent=1 // pred_fallthru
      _
    // Predicated region
    $region14: #{_lambda_.1} parent=1 // pred_check
      _
    $region15: #{_lambda_.1} parent=1 // pred_check_branch
      %49 = sbr.rel (0) target = $region17
    $region16: #{_lambda_.1} parent=1 // pred_region
      %50 = dma.done [#allocation3], 128
    $region17: #{_lambda_.1} parent=1 // pred_fallthru
      _
    // Predicated region
    $region18: #{_lambda_.1} parent=1 // pred_check
      _
    $region19: #{_lambda_.1} parent=1 // pred_check_branch
      %52 = sbr.rel (0) target = $region21
    $region20: #{_lambda_.1} parent=1 // pred_region
      %53 = dma.done [#allocation6], 768
    $region21: #{_lambda_.1} parent=1 // pred_fallthru
      _
    // Predicated region
    $region22: #{_lambda_.1} parent=1 // pred_check
      _
    $region23: #{_lambda_.1} parent=1 // pred_check_branch
      %55 = sbr.rel (0) target = $region25
    $region24: #{_lambda_.1} parent=1 // pred_region
      %56 = dma.done [#allocation6], 768
    $region25: #{_lambda_.1} parent=1 // pred_fallthru
      _
    %v57 = vld [vmem:[#allocation2] ss:$4 sm:$0x3]
    %s58 = scalar_lea.vmem [#allocation2], 1
    %v59 = vld [vmem:[%s58] ss:$4 sm:$0x3]
    %s60 = scalar_lea.vmem [#allocation2], 2
    %v61 = vld [vmem:[%s60] ss:$4 sm:$0x3]
    %v62 = vmul.f32 %v57, 688.0236
    %v63 = vmul.f32 %v59, 0.0
    %v64 = vadd.f32 %v62, %v63
    %v65 = vmul.f32 %v61, 319.85
    %v66 = vadd.f32 %v64, %v65
    %v67 = vadd.f32 %v66, 0.0
    %v68 = vmul.f32 %v57, 0.0
    %v69 = vmul.f32 %v59, 576.057
    %v70 = vadd.f32 %v68, %v69
    %v71 = vmul.f32 %v61, 240.632
    %v72 = vadd.f32 %v70, %v71
    %v73 = vadd.f32 %v72, 0.0
    %v74 = vadd.f32 %v68, %v63
    %v75 = vadd.f32 %v74, %v61
    %v76 = vadd.f32 %v75, 0.0
    %v77 = vrcp.pop %v76
    %v78 = vmul.f32 1.0, %v77
    %v79 = vmul.f32 %v67, %v78
    %v80 = vlaneseq
    %vm81 = vcmp.ge.s32.totalorder %v80, 0
    %vm82 = vcmp.lt.s32.totalorder %v80, 256
    %vm83 = vmand %vm81, %vm82
    %84 = vst.msk [vmem:[#allocation8] ss:$4 sm:$0x3] %vm83, %v79
    %v85 = vmul.f32 %v73, %v78
    %s86 = scalar_lea.vmem [#allocation8], 1
    %87 = vst.msk [vmem:[%s86] ss:$4 sm:$0x3] %vm83, %v85
    %s88 = scalar_lea.vmem [#allocation8], 2
    %89 = vst.msk [vmem:[%s88] ss:$4 sm:$0x3] %vm83, %v76
    %v90 = vld [vmem:[#allocation5] sm:$0xff]
    %v91 = vld [vmem:[#allocation5 + $0x8] sm:$0xff]
    %v92 = vld [vmem:[#allocation5 + $0x10] sm:$0xff]
    %v93 = vld [vmem:[#allocation5 + $0x18] sm:$0xff]
    %v94 = vld [vmem:[#allocation5 + $0x20] sm:$0xff]
    %v95 = vld [vmem:[#allocation5 + $0x28] sm:$0xff]
    %v96 = vld [vmem:[#allocation7] sm:$0xff]
    %v97 = vld [vmem:[#allocation7 + $0x8] sm:$0xff]
    %v98 = vld [vmem:[#allocation7 + $0x10] sm:$0xff]
    %v99 = vld [vmem:[#allocation7 + $0x18] sm:$0xff]
    %v100 = vld [vmem:[#allocation7 + $0x20] sm:$0xff]
    %v101 = vld [vmem:[#allocation7 + $0x28] sm:$0xff]
    %vm102 = vcmp.gt.f32.partialorder %v90, 0.0
    %vm103 = vcmp.gt.f32.partialorder %v91, 0.0
    %vm104 = vcmp.gt.f32.partialorder %v92, 0.0
    %vm105 = vcmp.gt.f32.partialorder %v93, 0.0
    %vm106 = vcmp.gt.f32.partialorder %v94, 0.0
    %vm107 = vcmp.gt.f32.partialorder %v95, 0.0
    %v108 = vmul.f32 %v96, 0.001
    %v109 = vmul.f32 %v97, 0.001
    %v110 = vmul.f32 %v98, 0.001
    %v111 = vmul.f32 %v99, 0.001
    %v112 = vmul.f32 %v100, 0.001
    %v113 = vmul.f32 %v101, 0.001
    %v114 = vsub.f32 %v90, %v108
    %v115 = vsub.f32 %v91, %v109
    %v116 = vsub.f32 %v92, %v110
    %v117 = vsub.f32 %v93, %v111
    %v118 = vsub.f32 %v94, %v112
    %v119 = vsub.f32 %v95, %v113
    %v120 = vsel %vm102, %v114, 0.0
    %v121 = vsel %vm103, %v115, 0.0
    %v122 = vsel %vm104, %v116, 0.0
    %v123 = vsel %vm105, %v117, 0.0
    %v124 = vsel %vm106, %v118, 0.0
    %v125 = vsel %vm107, %v119, 0.0
    %v126 = vmul.f32 %v120, %v120
    %v127 = vmul.f32 %v121, %v121
    %v128 = vmul.f32 %v122, %v122
    %v129 = vmul.f32 %v123, %v123
    %v130 = vmul.f32 %v124, %v124
    %v131 = vmul.f32 %v125, %v125
    %v132 = vadd.f32 %v126, %v127
    %v133 = vadd.f32 %v132, %v128
    %v134 = vadd.f32 %v133, %v129
    %v135 = vadd.f32 %v134, %v130
    %v136 = vadd.f32 %v135, %v131
    %137 = vadd.xlane.f32.xlu0 %v136
    %v138 = vpop.xlane.xlu0 %137
    %v139 = vrot.slane %v138, 4
    %v140 = vadd.f32 %v138, %v139
    %v141 = vrot.slane %v140, 2
    %v142 = vadd.f32 %v140, %v141
    %v143 = vrot.slane %v142, 1
    %v144 = vadd.f32 %v142, %v143
    %s145 = vtos %v144
    %v146 = vstv %s145
    %vm147 = vcmask 0
    %148 = vst.msk [vmem:[#allocation9] sm:$0x1] %vm147, %v146
    // Predicated region
    $region26: #{_lambda_.1} parent=1 // pred_check
      _
    $region27: #{_lambda_.1} parent=1 // pred_check_branch
      %150 = sbr.rel (0) target = $region29
    $region28: #{_lambda_.1} parent=1 // pred_region
      %s152 = ssub.s32 128, 128
      %153 = vsyncadd [#allocation4], %s152
      %s155 = sshll.u32 [#allocation8], 4
      %s156 = int_to_ptr.vmem [resolvable:$true] %s155
      %158 = dma.vmem_to_hbm [thread:$0]  %s156, 128, %s3, [#allocation4]
    $region29: #{_lambda_.1} parent=1 // pred_fallthru
      _
    // Predicated region
    $region30: #{_lambda_.1} parent=1 // pred_check
      _
    $region31: #{_lambda_.1} parent=1 // pred_check_branch
      %160 = sbr.rel (0) target = $region33
    $region32: #{_lambda_.1} parent=1 // pred_region
      %s162 = ssub.s32 16, 16
      %163 = vsyncadd [#allocation10], %s162
      %s165 = sshll.u32 [#allocation9], 4
      %s166 = int_to_ptr.vmem [resolvable:$true] %s165
      %168 = dma.vmem_to_hbm [thread:$0]  %s166, 16, %s4, [#allocation10]
    $region33: #{_lambda_.1} parent=1 // pred_fallthru
      _
    // Predicated region
    $region34: #{_lambda_.1} parent=1 // pred_check
      _
    $region35: #{_lambda_.1} parent=1 // pred_check_branch
      %170 = sbr.rel (0) target = $region37
    $region36: #{_lambda_.1} parent=1 // pred_region
      %171 = dma.done [#allocation4], 128
    $region37: #{_lambda_.1} parent=1 // pred_fallthru
      _
    // Predicated region
    $region38: #{_lambda_.1} parent=1 // pred_check
      _
    $region39: #{_lambda_.1} parent=1 // pred_check_branch
      %173 = sbr.rel (0) target = $region41
    $region40: #{_lambda_.1} parent=1 // pred_region
      %174 = dma.done [#allocation10], 16
    $region41: #{_lambda_.1} parent=1 // pred_fallthru
      _
    %175 = vsyncpa [#allocation3], 1
    %176 = vsyncpa [#allocation6], 1
    %177 = vsyncpa [#allocation4], 1
    %178 = vsyncpa [#allocation10], 1

</llo_original>
